<compile_context>
chip_gen: v7x
topology: tpu7x:2x2x1
jax: 0.10.0
libtpu: 0.0.40
codegen_flags: <defaults>
</compile_context>

<pallas_src>
import jax
import jax.numpy as jnp
from jax import lax
from jax.experimental import pallas as pl
from jax.experimental.pallas import tpu as pltpu


def _conv_block_kernel(x_ref, w1_ref, s1_ref, b1_ref, w2_ref, s2_ref, b2_ref,
                       o_ref, h1_ref):
    # x_ref : (Hp, Wp, Cin)  zero-padded input image, channels-last
    # w1_ref: (9*Cin, C)     conv1 weights, row-im2col layout
    # s1/b1 : (1, C)         folded BN1 scale / bias
    # w2_ref: (9*C, C)       conv2 weights, row-im2col layout
    # s2/b2 : (1, C)         folded BN2 scale / bias
    # o_ref : (H, W, C)      output image, channels-last
    # h1_ref: (Hp, Wp, C)    VMEM scratch: padded conv1 activation
    H, W, C = o_ref.shape

    w1 = w1_ref[...]
    s1 = s1_ref[...]
    b1 = b1_ref[...]
    w2 = w2_ref[...]
    s2 = s2_ref[...]
    b2 = b2_ref[...]

    # Zero the scratch so its 1-pixel halo is valid zero padding for conv2.
    h1_ref[...] = jnp.zeros_like(h1_ref)

    def conv_row(row_fn, w_mat, scale, bias):
        # Build the (W, 9*Cin_layer) im2col patch for one output row and run a
        # single MXU matmul + folded-BN affine + ReLU.
        cols = []
        for dh in range(3):
            r = row_fn(dh)                      # (Wp, Cin_layer)
            for dw in range(3):
                cols.append(r[dw:dw + W, :])    # (W, Cin_layer)
        patch = jnp.concatenate(cols, axis=1)   # (W, 9*Cin_layer)
        y = jnp.dot(patch, w_mat, preferred_element_type=jnp.float32)
        return jnp.maximum(y * scale + bias, 0.0)   # (W, C) float32

    zpad = jnp.zeros((1, C), jnp.float32)

    # ---- conv1 + BN1 + ReLU: write padded rows into the VMEM scratch. ----
    @pl.loop(0, H)
    def _(h):
        y = conv_row(lambda dh: x_ref[h + dh].astype(jnp.float32), w1, s1, b1)
        h1_ref[h + 1] = jnp.concatenate([zpad, y, zpad], axis=0)   # (Wp, C)

    # ---- conv2 + BN2 + ReLU: read the scratch, write the output rows. ----
    @pl.loop(0, H)
    def _(h):
        y = conv_row(lambda dh: h1_ref[h + dh], w2, s2, b2)
        o_ref[h] = y.astype(o_ref.dtype)


def _fold_bn(conv_bias, gamma, beta, mean, var, eps=1e-5):
    # BN(conv(x) + b) == conv(x) * scale + ((b - mean) * scale + beta)
    scale = gamma / jnp.sqrt(var + eps)
    bias = (conv_bias - mean) * scale + beta
    return scale.astype(jnp.float32), bias.astype(jnp.float32)


def _im2col_weights(w):
    # PyTorch layout (Cout, Cin, 3, 3) -> (9*Cin, Cout); row index =
    # (dh*3 + dw)*Cin + cin, matching the kernel's im2col patch order.
    cout, cin, kh, kw = w.shape
    return (jnp.transpose(w, (2, 3, 1, 0))
            .reshape(kh * kw * cin, cout)
            .astype(jnp.float32))


def conv_block_forward(x, params):
    """Eval-mode forward of conv_block on an NCHW tensor."""
    N, Cin, H, W = x.shape
    C = params["w1"].shape[0]
    Hp, Wp = H + 2, W + 2

    # NCHW -> NHWC + zero spatial halo so channels sit on the lane dimension.
    x_nhwc = jnp.transpose(x, (0, 2, 3, 1))
    x_pad = jnp.pad(x_nhwc, ((0, 0), (1, 1), (1, 1), (0, 0)))

    w1 = _im2col_weights(params["w1"])            # (9*Cin, C)
    w2 = _im2col_weights(params["w2"])            # (9*C,  C)
    s1, b1 = _fold_bn(params["b1"], params["gamma1"], params["beta1"],
                      params["mean1"], params["var1"])
    s2, b2 = _fold_bn(params["b2"], params["gamma2"], params["beta2"],
                      params["mean2"], params["var2"])
    s1 = s1.reshape(1, C)
    b1 = b1.reshape(1, C)
    s2 = s2.reshape(1, C)
    b2 = b2.reshape(1, C)

    itemsize = jnp.dtype(x.dtype).itemsize
    flops = 2 * N * H * W * (9 * Cin * C + 9 * C * C)
    bytes_accessed = (x_pad.size * itemsize            # input read
                      + N * H * W * C * itemsize       # output write
                      + (w1.size + w2.size + 4 * C) * 4)

    out_nhwc = pl.pallas_call(
        _conv_block_kernel,
        out_shape=jax.ShapeDtypeStruct((N, H, W, C), x.dtype),
        grid_spec=pltpu.PrefetchScalarGridSpec(
            num_scalar_prefetch=0,
            grid=(N,),
            in_specs=[
                pl.BlockSpec((pl.Squeezed(), Hp, Wp, Cin),
                             lambda n: (n, 0, 0, 0)),
                pl.BlockSpec((9 * Cin, C), lambda n: (0, 0)),
                pl.BlockSpec((1, C), lambda n: (0, 0)),
                pl.BlockSpec((1, C), lambda n: (0, 0)),
                pl.BlockSpec((9 * C, C), lambda n: (0, 0)),
                pl.BlockSpec((1, C), lambda n: (0, 0)),
                pl.BlockSpec((1, C), lambda n: (0, 0)),
            ],
            out_specs=pl.BlockSpec((pl.Squeezed(), H, W, C),
                                   lambda n: (n, 0, 0, 0)),
            scratch_shapes=[pltpu.VMEM((Hp, Wp, C), jnp.float32)],
        ),
        compiler_params=pltpu.CompilerParams(
            dimension_semantics=("parallel",)),
        cost_estimate=pl.CostEstimate(flops=flops, transcendentals=0,
                                      bytes_accessed=bytes_accessed),
    )(x_pad, w1, s1, b1, w2, s2, b2)

    return jnp.transpose(out_nhwc, (0, 3, 1, 2))


def conv_block_reference(x, params, eps=1e-5):
    # Pure-JAX eval-mode reference.
    def layer(z, w, b, gamma, beta, mean, var):
        y = lax.conv_general_dilated(
            z, w, window_strides=(1, 1), padding=((1, 1), (1, 1)),
            dimension_numbers=("NCHW", "OIHW", "NCHW"),
            precision=lax.Precision.HIGHEST)
        y = y + b[None, :, None, None]
        y = (y - mean[None, :, None, None]) / jnp.sqrt(
            var[None, :, None, None] + eps)
        y = y * gamma[None, :, None, None] + beta[None, :, None, None]
        return jnp.maximum(y, 0.0)

    y = layer(x, params["w1"], params["b1"], params["gamma1"],
              params["beta1"], params["mean1"], params["var1"])
    y = layer(y, params["w2"], params["b2"], params["gamma2"],
              params["beta2"], params["mean2"], params["var2"])
    return y


if __name__ == "__main__":
    key = jax.random.PRNGKey(0)
    N, ch_in, ch_out, H, W = 2, 4, 8, 16, 16
    ks = jax.random.split(key, 13)

    x = jax.random.normal(ks[0], (N, ch_in, H, W), dtype=jnp.float32)
    params = {
        "w1": 0.2 * jax.random.normal(ks[1], (ch_out, ch_in, 3, 3), jnp.float32),
        "b1": 0.1 * jax.random.normal(ks[2], (ch_out,), jnp.float32),
        "gamma1": 1.0 + 0.1 * jax.random.normal(ks[3], (ch_out,), jnp.float32),
        "beta1": 0.1 * jax.random.normal(ks[4], (ch_out,), jnp.float32),
        "mean1": 0.1 * jax.random.normal(ks[5], (ch_out,), jnp.float32),
        "var1": jax.random.uniform(ks[6], (ch_out,), jnp.float32, 0.5, 1.5),
        "w2": 0.2 * jax.random.normal(ks[7], (ch_out, ch_out, 3, 3), jnp.float32),
        "b2": 0.1 * jax.random.normal(ks[8], (ch_out,), jnp.float32),
        "gamma2": 1.0 + 0.1 * jax.random.normal(ks[9], (ch_out,), jnp.float32),
        "beta2": 0.1 * jax.random.normal(ks[10], (ch_out,), jnp.float32),
        "mean2": 0.1 * jax.random.normal(ks[11], (ch_out,), jnp.float32),
        "var2": jax.random.uniform(ks[12], (ch_out,), jnp.float32, 0.5, 1.5),
    }

    out = conv_block_forward(x, params)
    out = jax.block_until_ready(out)

    ref = conv_block_reference(x, params)
    assert out.shape == (N, ch_out, H, W), out.shape
    max_err = float(jnp.max(jnp.abs(out - ref)))
    assert jnp.allclose(out, ref, atol=5e-3, rtol=5e-3), max_err

    print("KERNEL_OK")
</pallas_src>

<mosaic_0001>
module attributes {stable_mosaic.version = 11 : i64} {
  func.func @_conv_block_kernel(%arg0: i32, %arg1: memref<1x18x18x4xf32, #tpu.memory_space<vmem>>, %arg2: memref<36x8xf32, #tpu.memory_space<vmem>>, %arg3: memref<1x8xf32, #tpu.memory_space<vmem>>, %arg4: memref<1x8xf32, #tpu.memory_space<vmem>>, %arg5: memref<72x8xf32, #tpu.memory_space<vmem>>, %arg6: memref<1x8xf32, #tpu.memory_space<vmem>>, %arg7: memref<1x8xf32, #tpu.memory_space<vmem>>, %arg8: memref<1x16x16x8xf32, #tpu.memory_space<vmem>>, %arg9: memref<18x18x8xf32, #tpu.memory_space<vmem>>) attributes {dimension_semantics = [#tpu.dimension_semantics<parallel>], iteration_bounds = array<i64: 2>, scalar_prefetch = 0 : i64, scratch_operands = 1 : i64, tpu.core_type = #tpu.core_type<tc>, window_params = [{transform_indices = @transform_0, window_bounds = array<i64: 1, 18, 18, 4>}, {pipeline_mode = #tpu.pipeline_mode<synchronous>, transform_indices = @transform_1, window_bounds = array<i64: 36, 8>}, {pipeline_mode = #tpu.pipeline_mode<synchronous>, transform_indices = @transform_2, window_bounds = array<i64: 1, 8>}, {pipeline_mode = #tpu.pipeline_mode<synchronous>, transform_indices = @transform_3, window_bounds = array<i64: 1, 8>}, {pipeline_mode = #tpu.pipeline_mode<synchronous>, transform_indices = @transform_4, window_bounds = array<i64: 72, 8>}, {pipeline_mode = #tpu.pipeline_mode<synchronous>, transform_indices = @transform_5, window_bounds = array<i64: 1, 8>}, {pipeline_mode = #tpu.pipeline_mode<synchronous>, transform_indices = @transform_6, window_bounds = array<i64: 1, 8>}, {transform_indices = @transform_7, window_bounds = array<i64: 1, 16, 16, 8>}]} {
    %c0 = arith.constant 0 : index
    %c0_0 = arith.constant 0 : index
    %0 = vector.load %arg2[%c0, %c0_0] : memref<36x8xf32, #tpu.memory_space<vmem>>, vector<36x8xf32>
    %c0_1 = arith.constant 0 : index
    %c0_2 = arith.constant 0 : index
    %1 = vector.load %arg3[%c0_1, %c0_2] : memref<1x8xf32, #tpu.memory_space<vmem>>, vector<1x8xf32>
    %c0_3 = arith.constant 0 : index
    %c0_4 = arith.constant 0 : index
    %2 = vector.load %arg4[%c0_3, %c0_4] : memref<1x8xf32, #tpu.memory_space<vmem>>, vector<1x8xf32>
    %c0_5 = arith.constant 0 : index
    %c0_6 = arith.constant 0 : index
    %3 = vector.load %arg5[%c0_5, %c0_6] : memref<72x8xf32, #tpu.memory_space<vmem>>, vector<72x8xf32>
    %c0_7 = arith.constant 0 : index
    %c0_8 = arith.constant 0 : index
    %4 = vector.load %arg6[%c0_7, %c0_8] : memref<1x8xf32, #tpu.memory_space<vmem>>, vector<1x8xf32>
    %c0_9 = arith.constant 0 : index
    %c0_10 = arith.constant 0 : index
    %5 = vector.load %arg7[%c0_9, %c0_10] : memref<1x8xf32, #tpu.memory_space<vmem>>, vector<1x8xf32>
    %cst = arith.constant 0.000000e+00 : f32
    %6 = vector.broadcast %cst : f32 to vector<18x18x8xf32>
    %c0_11 = arith.constant 0 : index
    %c0_12 = arith.constant 0 : index
    %c0_13 = arith.constant 0 : index
    %7 = vector.load %arg9[%c0_11, %c0_12, %c0_13] : memref<18x18x8xf32, #tpu.memory_space<vmem>>, vector<18x18x8xf32>
    tpu.vector_store %arg9[%c0_11, %c0_12, %c0_13], %6 {strides = array<i32>} : memref<18x18x8xf32, #tpu.memory_space<vmem>>, vector<18x18x8xf32>,
    %cst_14 = arith.constant 0.000000e+00 : f32
    %8 = vector.broadcast %cst_14 : f32 to vector<1x8xf32>
    %c0_i32 = arith.constant 0 : i32
    %c16_i32 = arith.constant 16 : i32
    %9 = arith.addi %c0_i32, %c16_i32 : i32
    %c1_i32 = arith.constant 1 : i32
    scf.for %arg10 = %c0_i32 to %9 step %c1_i32  : i32 {
      %c1_i32_20 = arith.constant 1 : i32
      %11 = arith.muli %arg10, %c1_i32_20 : i32
      %c0_i32_21 = arith.constant 0 : i32
      %12 = arith.addi %c0_i32_21, %11 : i32
      %c0_i32_22 = arith.constant 0 : i32
      %13 = arith.addi %12, %c0_i32_22 : i32
      %c0_23 = arith.constant 0 : index
      %14 = arith.index_cast %13 : i32 to index
      %c0_24 = arith.constant 0 : index
      %c0_25 = arith.constant 0 : index
      %15 = vector.load %arg1[%c0_23, %14, %c0_24, %c0_25] : memref<1x18x18x4xf32, #tpu.memory_space<vmem>>, vector<1x1x18x4xf32>
      %16 = vector.shape_cast %15 : vector<1x1x18x4xf32> to vector<18x4xf32>
      %17 = vector.extract_strided_slice %16 {offsets = [0, 0], sizes = [16, 4], strides = [1, 1]} : vector<18x4xf32> to vector<16x4xf32>
      %18 = vector.extract_strided_slice %16 {offsets = [1, 0], sizes = [16, 4], strides = [1, 1]} : vector<18x4xf32> to vector<16x4xf32>
      %19 = vector.extract_strided_slice %16 {offsets = [2, 0], sizes = [16, 4], strides = [1, 1]} : vector<18x4xf32> to vector<16x4xf32>
      %c1_i32_26 = arith.constant 1 : i32
      %20 = arith.addi %12, %c1_i32_26 : i32
      %c0_27 = arith.constant 0 : index
      %21 = arith.index_cast %20 : i32 to index
      %c0_28 = arith.constant 0 : index
      %c0_29 = arith.constant 0 : index
      %22 = vector.load %arg1[%c0_27, %21, %c0_28, %c0_29] : memref<1x18x18x4xf32, #tpu.memory_space<vmem>>, vector<1x1x18x4xf32>
      %23 = vector.shape_cast %22 : vector<1x1x18x4xf32> to vector<18x4xf32>
      %24 = vector.extract_strided_slice %23 {offsets = [0, 0], sizes = [16, 4], strides = [1, 1]} : vector<18x4xf32> to vector<16x4xf32>
      %25 = vector.extract_strided_slice %23 {offsets = [1, 0], sizes = [16, 4], strides = [1, 1]} : vector<18x4xf32> to vector<16x4xf32>
      %26 = vector.extract_strided_slice %23 {offsets = [2, 0], sizes = [16, 4], strides = [1, 1]} : vector<18x4xf32> to vector<16x4xf32>
      %c2_i32 = arith.constant 2 : i32
      %27 = arith.addi %12, %c2_i32 : i32
      %c0_30 = arith.constant 0 : index
      %28 = arith.index_cast %27 : i32 to index
      %c0_31 = arith.constant 0 : index
      %c0_32 = arith.constant 0 : index
      %29 = vector.load %arg1[%c0_30, %28, %c0_31, %c0_32] : memref<1x18x18x4xf32, #tpu.memory_space<vmem>>, vector<1x1x18x4xf32>
      %30 = vector.shape_cast %29 : vector<1x1x18x4xf32> to vector<18x4xf32>
      %31 = vector.extract_strided_slice %30 {offsets = [0, 0], sizes = [16, 4], strides = [1, 1]} : vector<18x4xf32> to vector<16x4xf32>
      %32 = vector.extract_strided_slice %30 {offsets = [1, 0], sizes = [16, 4], strides = [1, 1]} : vector<18x4xf32> to vector<16x4xf32>
      %33 = vector.extract_strided_slice %30 {offsets = [2, 0], sizes = [16, 4], strides = [1, 1]} : vector<18x4xf32> to vector<16x4xf32>
      %34 = tpu.concatenate %17, %18, %19, %24, %25, %26, %31, %32, %33 in 1 : vector<16x4xf32>, vector<16x4xf32>, vector<16x4xf32>, vector<16x4xf32>, vector<16x4xf32>, vector<16x4xf32>, vector<16x4xf32>, vector<16x4xf32>, vector<16x4xf32> -> vector<16x36xf32>
      %cst_33 = arith.constant dense<0.000000e+00> : vector<16x8xf32>
      %35 = tpu.matmul %34, %0, %cst_33 {dimension_numbers = #tpu.dot_dimension_numbers<[1], [0], [0], [1], [0, 0, 1, 1], [], []>} : vector<16x36xf32>, vector<36x8xf32>, vector<16x8xf32> -> vector<16x8xf32>
      %36 = vector.broadcast %1 : vector<1x8xf32> to vector<16x8xf32>
      %37 = arith.mulf %35, %36 : vector<16x8xf32>
      %38 = vector.broadcast %2 : vector<1x8xf32> to vector<16x8xf32>
      %39 = arith.addf %37, %38 : vector<16x8xf32>
      %cst_34 = arith.constant 0.000000e+00 : f32
      %40 = vector.broadcast %cst_34 : f32 to vector<16x8xf32>
      %41 = arith.maximumf %39, %40 : vector<16x8xf32>
      %42 = tpu.concatenate %8, %41, %8 in 0 : vector<1x8xf32>, vector<16x8xf32>, vector<1x8xf32> -> vector<18x8xf32>
      %c1_i32_35 = arith.constant 1 : i32
      %43 = arith.addi %12, %c1_i32_35 : i32
      %44 = arith.index_cast %43 : i32 to index
      %c0_36 = arith.constant 0 : index
      %c0_37 = arith.constant 0 : index
      %45 = vector.load %arg9[%44, %c0_36, %c0_37] : memref<18x18x8xf32, #tpu.memory_space<vmem>>, vector<1x18x8xf32>
      %46 = vector.shape_cast %45 : vector<1x18x8xf32> to vector<18x8xf32>
      %47 = vector.shape_cast %42 : vector<18x8xf32> to vector<1x18x8xf32>
      tpu.vector_store %arg9[%44, %c0_36, %c0_37], %47 {strides = array<i32>} : memref<18x18x8xf32, #tpu.memory_space<vmem>>, vector<1x18x8xf32>,
    }
    %c16_i32_15 = arith.constant 16 : i32
    %c0_i32_16 = arith.constant 0 : i32
    %c16_i32_17 = arith.constant 16 : i32
    %10 = arith.addi %c0_i32_16, %c16_i32_17 : i32
    %c1_i32_18 = arith.constant 1 : i32
    scf.for %arg10 = %c0_i32_16 to %10 step %c1_i32_18  : i32 {
      %c1_i32_20 = arith.constant 1 : i32
      %11 = arith.muli %arg10, %c1_i32_20 : i32
      %c0_i32_21 = arith.constant 0 : i32
      %12 = arith.addi %c0_i32_21, %11 : i32
      %c0_i32_22 = arith.constant 0 : i32
      %13 = arith.addi %12, %c0_i32_22 : i32
      %14 = arith.index_cast %13 : i32 to index
      %c0_23 = arith.constant 0 : index
      %c0_24 = arith.constant 0 : index
      %15 = vector.load %arg9[%14, %c0_23, %c0_24] : memref<18x18x8xf32, #tpu.memory_space<vmem>>, vector<1x18x8xf32>
      %16 = vector.shape_cast %15 : vector<1x18x8xf32> to vector<18x8xf32>
      %17 = vector.extract_strided_slice %16 {offsets = [0, 0], sizes = [16, 8], strides = [1, 1]} : vector<18x8xf32> to vector<16x8xf32>
      %18 = vector.extract_strided_slice %16 {offsets = [1, 0], sizes = [16, 8], strides = [1, 1]} : vector<18x8xf32> to vector<16x8xf32>
      %19 = vector.extract_strided_slice %16 {offsets = [2, 0], sizes = [16, 8], strides = [1, 1]} : vector<18x8xf32> to vector<16x8xf32>
      %c1_i32_25 = arith.constant 1 : i32
      %20 = arith.addi %12, %c1_i32_25 : i32
      %21 = arith.index_cast %20 : i32 to index
      %c0_26 = arith.constant 0 : index
      %c0_27 = arith.constant 0 : index
      %22 = vector.load %arg9[%21, %c0_26, %c0_27] : memref<18x18x8xf32, #tpu.memory_space<vmem>>, vector<1x18x8xf32>
      %23 = vector.shape_cast %22 : vector<1x18x8xf32> to vector<18x8xf32>
      %24 = vector.extract_strided_slice %23 {offsets = [0, 0], sizes = [16, 8], strides = [1, 1]} : vector<18x8xf32> to vector<16x8xf32>
      %25 = vector.extract_strided_slice %23 {offsets = [1, 0], sizes = [16, 8], strides = [1, 1]} : vector<18x8xf32> to vector<16x8xf32>
      %26 = vector.extract_strided_slice %23 {offsets = [2, 0], sizes = [16, 8], strides = [1, 1]} : vector<18x8xf32> to vector<16x8xf32>
      %c2_i32 = arith.constant 2 : i32
      %27 = arith.addi %12, %c2_i32 : i32
      %28 = arith.index_cast %27 : i32 to index
      %c0_28 = arith.constant 0 : index
      %c0_29 = arith.constant 0 : index
      %29 = vector.load %arg9[%28, %c0_28, %c0_29] : memref<18x18x8xf32, #tpu.memory_space<vmem>>, vector<1x18x8xf32>
      %30 = vector.shape_cast %29 : vector<1x18x8xf32> to vector<18x8xf32>
      %31 = vector.extract_strided_slice %30 {offsets = [0, 0], sizes = [16, 8], strides = [1, 1]} : vector<18x8xf32> to vector<16x8xf32>
      %32 = vector.extract_strided_slice %30 {offsets = [1, 0], sizes = [16, 8], strides = [1, 1]} : vector<18x8xf32> to vector<16x8xf32>
      %33 = vector.extract_strided_slice %30 {offsets = [2, 0], sizes = [16, 8], strides = [1, 1]} : vector<18x8xf32> to vector<16x8xf32>
      %34 = tpu.concatenate %17, %18, %19, %24, %25, %26, %31, %32, %33 in 1 : vector<16x8xf32>, vector<16x8xf32>, vector<16x8xf32>, vector<16x8xf32>, vector<16x8xf32>, vector<16x8xf32>, vector<16x8xf32>, vector<16x8xf32>, vector<16x8xf32> -> vector<16x72xf32>
      %cst_30 = arith.constant dense<0.000000e+00> : vector<16x8xf32>
      %35 = tpu.matmul %34, %3, %cst_30 {dimension_numbers = #tpu.dot_dimension_numbers<[1], [0], [0], [1], [0, 0, 1, 1], [], []>} : vector<16x72xf32>, vector<72x8xf32>, vector<16x8xf32> -> vector<16x8xf32>
      %36 = vector.broadcast %4 : vector<1x8xf32> to vector<16x8xf32>
      %37 = arith.mulf %35, %36 : vector<16x8xf32>
      %38 = vector.broadcast %5 : vector<1x8xf32> to vector<16x8xf32>
      %39 = arith.addf %37, %38 : vector<16x8xf32>
      %cst_31 = arith.constant 0.000000e+00 : f32
      %40 = vector.broadcast %cst_31 : f32 to vector<16x8xf32>
      %41 = arith.maximumf %39, %40 : vector<16x8xf32>
      %c0_32 = arith.constant 0 : index
      %42 = arith.index_cast %12 : i32 to index
      %c0_33 = arith.constant 0 : index
      %c0_34 = arith.constant 0 : index
      %43 = vector.load %arg8[%c0_32, %42, %c0_33, %c0_34] : memref<1x16x16x8xf32, #tpu.memory_space<vmem>>, vector<1x1x16x8xf32>
      %44 = vector.shape_cast %43 : vector<1x1x16x8xf32> to vector<16x8xf32>
      %45 = vector.shape_cast %41 : vector<16x8xf32> to vector<1x1x16x8xf32>
      tpu.vector_store %arg8[%c0_32, %42, %c0_33, %c0_34], %45 {strides = array<i32>} : memref<1x16x16x8xf32, #tpu.memory_space<vmem>>, vector<1x1x16x8xf32>,
    }
    %c16_i32_19 = arith.constant 16 : i32
    return
  }
  func.func @transform_0(%arg0: i32) -> (i32, i32, i32, i32) {
    %c0_i32 = arith.constant 0 : i32
    %c0_i32_0 = arith.constant 0 : i32
    %c0_i32_1 = arith.constant 0 : i32
    %c0_i32_2 = arith.constant 0 : i32
    return %arg0, %c0_i32, %c0_i32_0, %c0_i32_1 : i32, i32, i32, i32
  }
  func.func @transform_1(%arg0: i32) -> (i32, i32) {
    %c0_i32 = arith.constant 0 : i32
    %c0_i32_0 = arith.constant 0 : i32
    %c0_i32_1 = arith.constant 0 : i32
    return %c0_i32, %c0_i32_0 : i32, i32
  }
  func.func @transform_2(%arg0: i32) -> (i32, i32) {
    %c0_i32 = arith.constant 0 : i32
    %c0_i32_0 = arith.constant 0 : i32
    %c0_i32_1 = arith.constant 0 : i32
    return %c0_i32, %c0_i32_0 : i32, i32
  }
  func.func @transform_3(%arg0: i32) -> (i32, i32) {
    %c0_i32 = arith.constant 0 : i32
    %c0_i32_0 = arith.constant 0 : i32
    %c0_i32_1 = arith.constant 0 : i32
    return %c0_i32, %c0_i32_0 : i32, i32
  }
  func.func @transform_4(%arg0: i32) -> (i32, i32) {
    %c0_i32 = arith.constant 0 : i32
    %c0_i32_0 = arith.constant 0 : i32
    %c0_i32_1 = arith.constant 0 : i32
    return %c0_i32, %c0_i32_0 : i32, i32
  }
  func.func @transform_5(%arg0: i32) -> (i32, i32) {
    %c0_i32 = arith.constant 0 : i32
    %c0_i32_0 = arith.constant 0 : i32
    %c0_i32_1 = arith.constant 0 : i32
    return %c0_i32, %c0_i32_0 : i32, i32
  }
  func.func @transform_6(%arg0: i32) -> (i32, i32) {
    %c0_i32 = arith.constant 0 : i32
    %c0_i32_0 = arith.constant 0 : i32
    %c0_i32_1 = arith.constant 0 : i32
    return %c0_i32, %c0_i32_0 : i32, i32
  }
  func.func @transform_7(%arg0: i32) -> (i32, i32, i32, i32) {
    %c0_i32 = arith.constant 0 : i32
    %c0_i32_0 = arith.constant 0 : i32
    %c0_i32_1 = arith.constant 0 : i32
    %c0_i32_2 = arith.constant 0 : i32
    return %arg0, %c0_i32, %c0_i32_0, %c0_i32_1 : i32, i32, i32, i32
  }
}

</mosaic_0001>

<llo_original>
// kernel: tpu_custom_call.1
$region0: #{tpu_custom_call.1}
  #allocation0 [shape = 'u32[]', space=smem, size = 0x4, offset = 0x4, fixed_abs, tag = 'smem constant byte address 0x4 - core index']
  #allocation1 [shape = 'u32[144,128]{1,0:T(1,128)}', space=vmem, size = 0x12000, scoped, tag = 'internal scratch']
  #allocation2 [shape = 'f32[18,18,8]{2,1,0:T(8,128)}', space=vmem, size = 0x36000, scoped, tag = 'scratch operand']
  %s0 = inlined_call_operand.vmem [shape: f32[2,18,18,4], index: 0, kind: input, shape index: {}]
  %s1 = inlined_call_operand.vmem [shape: f32[36,8], index: 1, kind: input, shape index: {}]
  %s2 = inlined_call_operand.vmem [shape: f32[1,8], index: 2, kind: input, shape index: {}]
  %s3 = inlined_call_operand.vmem [shape: f32[1,8], index: 3, kind: input, shape index: {}]
  %s4 = inlined_call_operand.vmem [shape: f32[72,8], index: 4, kind: input, shape index: {}]
  %s5 = inlined_call_operand.vmem [shape: f32[1,8], index: 5, kind: input, shape index: {}]
  %s6 = inlined_call_operand.vmem [shape: f32[1,8], index: 6, kind: input, shape index: {}]
  %s7 = inlined_call_operand.vmem [shape: f32[2,16,16,8], index: 7, kind: output, shape index: {}]
  %s8 = sld [smem:[#allocation0]]
  $region75: #{tpu_custom_call.1} parent=0
    _
  %s10 = ssub.s32 1, %s8
  %s11 = scalar_select 0, %s10, %s8
  loop: start=0, step=1, limit=4
  $region2: #{tpu_custom_call.1} parent=0 // loop_pre_header
    _
  $region3: #{tpu_custom_call.1} parent=0 // loop_header
    %s13 = sphi 0, %s17
    %p14 = scmp.ge.s32.totalorder %s13, 4
    %s23 = sphi 0, %s25
    %s26 = sphi 0, %s23
    %s27 = sphi 0, %s26
    %s43 = sphi 0, %s27
    %s47 = sphi 0, %s47
    %s49 = sphi 0, %s47
    %s50 = sphi 0, %s49
    %s64 = sphi 0, %s50
    %s68 = sphi 0, %s68
    %s70 = sphi 0, %s68
    %s71 = sphi 0, %s70
    %s85 = sphi 0, %s71
    %s89 = sphi 0, %s89
    %s91 = sphi 0, %s89
    %s92 = sphi 0, %s91
    %s106 = sphi 0, %s92
    %s110 = sphi 0, %s110
    %s112 = sphi 0, %s110
    %s113 = sphi 0, %s112
    %s127 = sphi 0, %s113
    %s131 = sphi 0, %s131
    %s133 = sphi 0, %s131
    %s134 = sphi 0, %s133
    %s148 = sphi 0, %s134
    %s152 = sphi 0, %s152
    %s154 = sphi 0, %s152
    %s155 = sphi 0, %s154
    %s169 = sphi 0, %s155
    %s175 = sphi 0, %s177
    %s178 = sphi 0, %s175
    %s179 = sphi 0, %s178
    %s195 = sphi 0, %s179
  $region4: #{tpu_custom_call.1} parent=0 // loop_header_branch
    %16 = sbr.rel (%p14) target = $region8
  $region5: #{tpu_custom_call.1} parent=0 // loop_body
    %s18 = ssub.s32 %s13, 1
    %s19 = ssub.s32 %s13, 2
    %s20 = sadd.s32 %s13, 1
    %s21 = ssub.s32 %s13, %s20
    %p22 = scmp.eq.s32.totalorder %s21, 0
    %s24 = sadd.s32 %s23, 1
    %s25 = scalar_select %p22, %s23, %s24
    %p28 = pneg %p22
    %p29 = scmp.eq.s32.totalorder %s13, 1
    %p30 = por %p28, %p29
    %p31 = scmp.ne.s32.totalorder %s23, %s26
    %p32 = scmp.eq.s32.totalorder %s13, 0
    %p33 = por %p31, %p32
    %p34 = scmp.ne.s32.totalorder %s23, %s26
    %p35 = scmp.eq.s32.totalorder %s18, 1
    %p36 = por %p34, %p35
    %p37 = scmp.ne.s32.totalorder %s26, %s27
    %p38 = scmp.eq.s32.totalorder %s18, 0
    %p39 = por %p37, %p38
    %p40 = scmp.ne.s32.totalorder %s26, %s27
    %p41 = scmp.eq.s32.totalorder %s19, 1
    %p42 = por %p40, %p41
    %p44 = scmp.ne.s32.totalorder %s27, %s43
    %p45 = scmp.eq.s32.totalorder %s19, 0
    %p46 = por %p44, %p45
    %s48 = sadd.s32 %s47, 1
    %p51 = scmp.eq.s32.totalorder %s13, 1
    %p52 = scmp.ne.s32.totalorder %s47, %s49
    %p53 = scmp.eq.s32.totalorder %s13, 0
    %p54 = por %p52, %p53
    %p55 = scmp.ne.s32.totalorder %s47, %s49
    %p56 = scmp.eq.s32.totalorder %s18, 1
    %p57 = por %p55, %p56
    %p58 = scmp.ne.s32.totalorder %s49, %s50
    %p59 = scmp.eq.s32.totalorder %s18, 0
    %p60 = por %p58, %p59
    %p61 = scmp.ne.s32.totalorder %s49, %s50
    %p62 = scmp.eq.s32.totalorder %s19, 1
    %p63 = por %p61, %p62
    %p65 = scmp.ne.s32.totalorder %s50, %s64
    %p66 = scmp.eq.s32.totalorder %s19, 0
    %p67 = por %p65, %p66
    %s69 = sadd.s32 %s68, 1
    %p72 = scmp.eq.s32.totalorder %s13, 1
    %p73 = scmp.ne.s32.totalorder %s68, %s70
    %p74 = scmp.eq.s32.totalorder %s13, 0
    %p75 = por %p73, %p74
    %p76 = scmp.ne.s32.totalorder %s68, %s70
    %p77 = scmp.eq.s32.totalorder %s18, 1
    %p78 = por %p76, %p77
    %p79 = scmp.ne.s32.totalorder %s70, %s71
    %p80 = scmp.eq.s32.totalorder %s18, 0
    %p81 = por %p79, %p80
    %p82 = scmp.ne.s32.totalorder %s70, %s71
    %p83 = scmp.eq.s32.totalorder %s19, 1
    %p84 = por %p82, %p83
    %p86 = scmp.ne.s32.totalorder %s71, %s85
    %p87 = scmp.eq.s32.totalorder %s19, 0
    %p88 = por %p86, %p87
    %s90 = sadd.s32 %s89, 1
    %p93 = scmp.eq.s32.totalorder %s13, 1
    %p94 = scmp.ne.s32.totalorder %s89, %s91
    %p95 = scmp.eq.s32.totalorder %s13, 0
    %p96 = por %p94, %p95
    %p97 = scmp.ne.s32.totalorder %s89, %s91
    %p98 = scmp.eq.s32.totalorder %s18, 1
    %p99 = por %p97, %p98
    %p100 = scmp.ne.s32.totalorder %s91, %s92
    %p101 = scmp.eq.s32.totalorder %s18, 0
    %p102 = por %p100, %p101
    %p103 = scmp.ne.s32.totalorder %s91, %s92
    %p104 = scmp.eq.s32.totalorder %s19, 1
    %p105 = por %p103, %p104
    %p107 = scmp.ne.s32.totalorder %s92, %s106
    %p108 = scmp.eq.s32.totalorder %s19, 0
    %p109 = por %p107, %p108
    %s111 = sadd.s32 %s110, 1
    %p114 = scmp.eq.s32.totalorder %s13, 1
    %p115 = scmp.ne.s32.totalorder %s110, %s112
    %p116 = scmp.eq.s32.totalorder %s13, 0
    %p117 = por %p115, %p116
    %p118 = scmp.ne.s32.totalorder %s110, %s112
    %p119 = scmp.eq.s32.totalorder %s18, 1
    %p120 = por %p118, %p119
    %p121 = scmp.ne.s32.totalorder %s112, %s113
    %p122 = scmp.eq.s32.totalorder %s18, 0
    %p123 = por %p121, %p122
    %p124 = scmp.ne.s32.totalorder %s112, %s113
    %p125 = scmp.eq.s32.totalorder %s19, 1
    %p126 = por %p124, %p125
    %p128 = scmp.ne.s32.totalorder %s113, %s127
    %p129 = scmp.eq.s32.totalorder %s19, 0
    %p130 = por %p128, %p129
    %s132 = sadd.s32 %s131, 1
    %p135 = scmp.eq.s32.totalorder %s13, 1
    %p136 = scmp.ne.s32.totalorder %s131, %s133
    %p137 = scmp.eq.s32.totalorder %s13, 0
    %p138 = por %p136, %p137
    %p139 = scmp.ne.s32.totalorder %s131, %s133
    %p140 = scmp.eq.s32.totalorder %s18, 1
    %p141 = por %p139, %p140
    %p142 = scmp.ne.s32.totalorder %s133, %s134
    %p143 = scmp.eq.s32.totalorder %s18, 0
    %p144 = por %p142, %p143
    %p145 = scmp.ne.s32.totalorder %s133, %s134
    %p146 = scmp.eq.s32.totalorder %s19, 1
    %p147 = por %p145, %p146
    %p149 = scmp.ne.s32.totalorder %s134, %s148
    %p150 = scmp.eq.s32.totalorder %s19, 0
    %p151 = por %p149, %p150
    %s153 = sadd.s32 %s152, 1
    %p156 = scmp.eq.s32.totalorder %s13, 1
    %p157 = scmp.ne.s32.totalorder %s152, %s154
    %p158 = scmp.eq.s32.totalorder %s13, 0
    %p159 = por %p157, %p158
    %p160 = scmp.ne.s32.totalorder %s152, %s154
    %p161 = scmp.eq.s32.totalorder %s18, 1
    %p162 = por %p160, %p161
    %p163 = scmp.ne.s32.totalorder %s154, %s155
    %p164 = scmp.eq.s32.totalorder %s18, 0
    %p165 = por %p163, %p164
    %p166 = scmp.ne.s32.totalorder %s154, %s155
    %p167 = scmp.eq.s32.totalorder %s19, 1
    %p168 = por %p166, %p167
    %p170 = scmp.ne.s32.totalorder %s155, %s169
    %p171 = scmp.eq.s32.totalorder %s19, 0
    %p172 = por %p170, %p171
    %s173 = ssub.s32 %s13, %s20
    %p174 = scmp.eq.s32.totalorder %s173, 0
    %s176 = sadd.s32 %s175, 1
    %s177 = scalar_select %p174, %s175, %s176
    %p180 = pneg %p174
    %p181 = scmp.eq.s32.totalorder %s13, 1
    %p182 = por %p180, %p181
    %p183 = scmp.ne.s32.totalorder %s175, %s178
    %p184 = scmp.eq.s32.totalorder %s13, 0
    %p185 = por %p183, %p184
    %p186 = scmp.ne.s32.totalorder %s175, %s178
    %p187 = scmp.eq.s32.totalorder %s18, 1
    %p188 = por %p186, %p187
    %p189 = scmp.ne.s32.totalorder %s178, %s179
    %p190 = scmp.eq.s32.totalorder %s18, 0
    %p191 = por %p189, %p190
    %p192 = scmp.ne.s32.totalorder %s178, %s179
    %p193 = scmp.eq.s32.totalorder %s19, 1
    %p194 = por %p192, %p193
    %p196 = scmp.ne.s32.totalorder %s179, %s195
    %p197 = scmp.eq.s32.totalorder %s19, 0
    %p198 = por %p196, %p197
    %p199 = scmp.le.s32.totalorder 1, %s13
    %p200 = scmp.lt.s32.totalorder %s13, 3
    %p201 = pnand %p199, %p200
    %p202 = pneg %p201
    // Predicated region
    $region9: #{tpu_custom_call.1} parent=5 // pred_check
      _
    $region10: #{tpu_custom_call.1} parent=5 // pred_check_branch
      %204 = sbr.rel (%p201) target = $region12
    $region11: #{tpu_custom_call.1} parent=5 // pred_region
      %s205 = ssub.s32 %s13, 1
      // Predicated region
      $region13: #{tpu_custom_call.1} parent=11 // pred_check
        %p206 = pneg %p60
      $region14: #{tpu_custom_call.1} parent=11 // pred_check_branch
        %208 = sbr.rel (%p206) target = $region16
      $region15: #{tpu_custom_call.1} parent=11 // pred_region
        _
      $region16: #{tpu_custom_call.1} parent=11 // pred_fallthru
        _
      // Predicated region
      $region17: #{tpu_custom_call.1} parent=11 // pred_check
        %p209 = pneg %p81
      $region18: #{tpu_custom_call.1} parent=11 // pred_check_branch
        %211 = sbr.rel (%p209) target = $region20
      $region19: #{tpu_custom_call.1} parent=11 // pred_region
        _
      $region20: #{tpu_custom_call.1} parent=11 // pred_fallthru
        _
      // Predicated region
      $region21: #{tpu_custom_call.1} parent=11 // pred_check
        %p212 = pneg %p102
      $region22: #{tpu_custom_call.1} parent=11 // pred_check_branch
        %214 = sbr.rel (%p212) target = $region24
      $region23: #{tpu_custom_call.1} parent=11 // pred_region
        _
      $region24: #{tpu_custom_call.1} parent=11 // pred_fallthru
        _
      // Predicated region
      $region25: #{tpu_custom_call.1} parent=11 // pred_check
        %p215 = pneg %p123
      $region26: #{tpu_custom_call.1} parent=11 // pred_check_branch
        %217 = sbr.rel (%p215) target = $region28
      $region27: #{tpu_custom_call.1} parent=11 // pred_region
        _
      $region28: #{tpu_custom_call.1} parent=11 // pred_fallthru
        _
      // Predicated region
      $region29: #{tpu_custom_call.1} parent=11 // pred_check
        %p218 = pneg %p144
      $region30: #{tpu_custom_call.1} parent=11 // pred_check_branch
        %220 = sbr.rel (%p218) target = $region32
      $region31: #{tpu_custom_call.1} parent=11 // pred_region
        _
      $region32: #{tpu_custom_call.1} parent=11 // pred_fallthru
        _
      // Predicated region
      $region33: #{tpu_custom_call.1} parent=11 // pred_check
        %p221 = pneg %p165
      $region34: #{tpu_custom_call.1} parent=11 // pred_check_branch
        %223 = sbr.rel (%p221) target = $region36
      $region35: #{tpu_custom_call.1} parent=11 // pred_region
        _
      $region36: #{tpu_custom_call.1} parent=11 // pred_fallthru
        _
    $region12: #{tpu_custom_call.1} parent=5 // pred_fallthru
      _
    %p224 = scmp.lt.s32.totalorder %s13, 2
    // Predicated region
    $region37: #{tpu_custom_call.1} parent=5 // pred_check
      %p225 = pneg %p224
    $region38: #{tpu_custom_call.1} parent=5 // pred_check_branch
      %227 = sbr.rel (%p225) target = $region40
    $region39: #{tpu_custom_call.1} parent=5 // pred_region
      // Predicated region
      $region41: #{tpu_custom_call.1} parent=39 // pred_check
        %p228 = pneg %p33
      $region42: #{tpu_custom_call.1} parent=39 // pred_check_branch
        %230 = sbr.rel (%p228) target = $region44
      $region43: #{tpu_custom_call.1} parent=39 // pred_region
        %p231 = scmp.lt.s32.totalorder %s13, 1
        %s232 = scalar_select %p231, %s13, 1
        %s233 = smul.addr %s232, 54
        %s234 = smul.addr %s233, 8
        %s235 = scalar_lea.vmem %s0, %s234
      $region44: #{tpu_custom_call.1} parent=39 // pred_fallthru
        _
    $region40: #{tpu_custom_call.1} parent=5 // pred_fallthru
      _
    %p236 = scmp.le.s32.totalorder 1, %s13
    %p237 = scmp.lt.s32.totalorder %s13, 3
    %p238 = pnand %p236, %p237
    %p239 = pneg %p238
    // Predicated region
    $region45: #{tpu_custom_call.1} parent=5 // pred_check
      _
    $region46: #{tpu_custom_call.1} parent=5 // pred_check_branch
      %241 = sbr.rel (%p238) target = $region48
    $region47: #{tpu_custom_call.1} parent=5 // pred_region
      %s242 = ssub.s32 %s13, 1
      %p243 = scmp.lt.s32.totalorder %s18, 1
      %s244 = scalar_select %p243, %s18, 1
      %s245 = smul.addr %s244, 54
      %s246 = smul.addr %s245, 8
      %s247 = scalar_lea.vmem %s0, %s246
      %p248 = pneg %p39
      %p249 = pneg %p36
      %p250 = pneg %p60
      %p251 = pneg %p57
      %p252 = pneg %p81
      %p253 = pneg %p78
      %p254 = pneg %p102
      %p255 = pneg %p99
      %p256 = pneg %p123
      %p257 = pneg %p120
      %p258 = pneg %p144
      %p259 = pneg %p141
      %p260 = pneg %p165
      %p261 = pneg %p162
      %p262 = pneg %p191
      %p263 = pneg %p188
      %p264 = scmp.lt.s32.totalorder %s18, 1
      %s265 = scalar_select %p264, %s18, 1
      %s266 = smul.addr %s265, 32
      %s267 = smul.addr %s266, 8
      %s268 = scalar_lea.vmem %s7, %s267
      %p269 = scmp.lt.s32.totalorder %s18, 1
      %s270 = scalar_select %p269, %s18, 1
      %s271 = smul.addr %s270, 54
      %s272 = smul.addr %s271, 8
      %s273 = scalar_lea.vmem %s0, %s272
      %p274 = scmp.lt.s32.totalorder %s18, 1
      %s275 = scalar_select %p274, %s18, 1
      %s276 = smul.addr %s275, 32
      %s277 = smul.addr %s276, 8
      %s278 = scalar_lea.vmem %s7, %s277
      %v279 = vld [vmem:[%s1] sm:$0xff]
      %v280 = vld [vmem:[%s1 + $0x8] sm:$0xff]
      %v281 = vld [vmem:[%s1 + $0x10] sm:$0xff]
      %v282 = vld [vmem:[%s1 + $0x18] sm:$0xff]
      %v283 = vld [vmem:[%s1 + $0x20] sm:$0xf]
      %v284 = vld [vmem:[%s2] sm:$0x1]
      %v285 = vld [vmem:[%s3] sm:$0x1]
      %v286 = vld [vmem:[%s4] sm:$0xff]
      %v287 = vld [vmem:[%s4 + $0x8] sm:$0xff]
      %v288 = vld [vmem:[%s4 + $0x10] sm:$0xff]
      %v289 = vld [vmem:[%s4 + $0x18] sm:$0xff]
      %v290 = vld [vmem:[%s4 + $0x20] sm:$0xff]
      %v291 = vld [vmem:[%s4 + $0x28] sm:$0xff]
      %v292 = vld [vmem:[%s4 + $0x30] sm:$0xff]
      %v293 = vld [vmem:[%s4 + $0x38] sm:$0xff]
      %v294 = vld [vmem:[%s4 + $0x40] sm:$0xff]
      %v295 = vld [vmem:[%s5] sm:$0x1]
      %v296 = vld [vmem:[%s6] sm:$0x1]
      %vm297 = vcmask 64512
      %298 = vst.msk [vmem:[#allocation2] sm:$0xff] %vm297, 0.0
      %299 = vst.msk [vmem:[#allocation2 + $0x8] sm:$0xff] %vm297, 0.0
      %vm300 = vcmask 58368
      %301 = vst.msk [vmem:[#allocation2 + $0x10] sm:$0x3] %vm300, 0.0
      %302 = vst.msk [vmem:[#allocation2 + $0x18] sm:$0xff] %vm297, 0.0
      %303 = vst.msk [vmem:[#allocation2 + $0x20] sm:$0xff] %vm297, 0.0
      %304 = vst.msk [vmem:[#allocation2 + $0x28] sm:$0x3] %vm300, 0.0
      %305 = vst.msk [vmem:[#allocation2 + $0x30] sm:$0xff] %vm297, 0.0
      %306 = vst.msk [vmem:[#allocation2 + $0x38] sm:$0xff] %vm297, 0.0
      %307 = vst.msk [vmem:[#allocation2 + $0x40] sm:$0x3] %vm300, 0.0
      %308 = vst.msk [vmem:[#allocation2 + $0x48] sm:$0xff] %vm297, 0.0
      %309 = vst.msk [vmem:[#allocation2 + $0x50] sm:$0xff] %vm297, 0.0
      %310 = vst.msk [vmem:[#allocation2 + $0x58] sm:$0x3] %vm300, 0.0
      %311 = vst.msk [vmem:[#allocation2 + $0x60] sm:$0xff] %vm297, 0.0
      %312 = vst.msk [vmem:[#allocation2 + $0x68] sm:$0xff] %vm297, 0.0
      %313 = vst.msk [vmem:[#allocation2 + $0x70] sm:$0x3] %vm300, 0.0
      %314 = vst.msk [vmem:[#allocation2 + $0x78] sm:$0xff] %vm297, 0.0
      %315 = vst.msk [vmem:[#allocation2 + $0x80] sm:$0xff] %vm297, 0.0
      %316 = vst.msk [vmem:[#allocation2 + $0x88] sm:$0x3] %vm300, 0.0
      %317 = vst.msk [vmem:[#allocation2 + $0x90] sm:$0xff] %vm297, 0.0
      %318 = vst.msk [vmem:[#allocation2 + $0x98] sm:$0xff] %vm297, 0.0
      %319 = vst.msk [vmem:[#allocation2 + $0xa0] sm:$0x3] %vm300, 0.0
      %320 = vst.msk [vmem:[#allocation2 + $0xa8] sm:$0xff] %vm297, 0.0
      %321 = vst.msk [vmem:[#allocation2 + $0xb0] sm:$0xff] %vm297, 0.0
      %322 = vst.msk [vmem:[#allocation2 + $0xb8] sm:$0x3] %vm300, 0.0
      %323 = vst.msk [vmem:[#allocation2 + $0xc0] sm:$0xff] %vm297, 0.0
      %324 = vst.msk [vmem:[#allocation2 + $0xc8] sm:$0xff] %vm297, 0.0
      %325 = vst.msk [vmem:[#allocation2 + $0xd0] sm:$0x3] %vm300, 0.0
      %326 = vst.msk [vmem:[#allocation2 + $0xd8] sm:$0xff] %vm297, 0.0
      %327 = vst.msk [vmem:[#allocation2 + $0xe0] sm:$0xff] %vm297, 0.0
      %328 = vst.msk [vmem:[#allocation2 + $0xe8] sm:$0x3] %vm300, 0.0
      %329 = vst.msk [vmem:[#allocation2 + $0xf0] sm:$0xff] %vm297, 0.0
      %330 = vst.msk [vmem:[#allocation2 + $0xf8] sm:$0xff] %vm297, 0.0
      %331 = vst.msk [vmem:[#allocation2 + $0x100] sm:$0x3] %vm300, 0.0
      %332 = vst.msk [vmem:[#allocation2 + $0x108] sm:$0xff] %vm297, 0.0
      %333 = vst.msk [vmem:[#allocation2 + $0x110] sm:$0xff] %vm297, 0.0
      %334 = vst.msk [vmem:[#allocation2 + $0x118] sm:$0x3] %vm300, 0.0
      %335 = vst.msk [vmem:[#allocation2 + $0x120] sm:$0xff] %vm297, 0.0
      %336 = vst.msk [vmem:[#allocation2 + $0x128] sm:$0xff] %vm297, 0.0
      %337 = vst.msk [vmem:[#allocation2 + $0x130] sm:$0x3] %vm300, 0.0
      %338 = vst.msk [vmem:[#allocation2 + $0x138] sm:$0xff] %vm297, 0.0
      %339 = vst.msk [vmem:[#allocation2 + $0x140] sm:$0xff] %vm297, 0.0
      %340 = vst.msk [vmem:[#allocation2 + $0x148] sm:$0x3] %vm300, 0.0
      %341 = vst.msk [vmem:[#allocation2 + $0x150] sm:$0xff] %vm297, 0.0
      %342 = vst.msk [vmem:[#allocation2 + $0x158] sm:$0xff] %vm297, 0.0
      %343 = vst.msk [vmem:[#allocation2 + $0x160] sm:$0x3] %vm300, 0.0
      %344 = vst.msk [vmem:[#allocation2 + $0x168] sm:$0xff] %vm297, 0.0
      %345 = vst.msk [vmem:[#allocation2 + $0x170] sm:$0xff] %vm297, 0.0
      %346 = vst.msk [vmem:[#allocation2 + $0x178] sm:$0x3] %vm300, 0.0
      %347 = vst.msk [vmem:[#allocation2 + $0x180] sm:$0xff] %vm297, 0.0
      %348 = vst.msk [vmem:[#allocation2 + $0x188] sm:$0xff] %vm297, 0.0
      %349 = vst.msk [vmem:[#allocation2 + $0x190] sm:$0x3] %vm300, 0.0
      %350 = vst.msk [vmem:[#allocation2 + $0x198] sm:$0xff] %vm297, 0.0
      %351 = vst.msk [vmem:[#allocation2 + $0x1a0] sm:$0xff] %vm297, 0.0
      %352 = vst.msk [vmem:[#allocation2 + $0x1a8] sm:$0x3] %vm300, 0.0
      loop: start=0, step=1, limit=16
      $region49: #{tpu_custom_call.1} parent=47 // loop_pre_header
        _
      $region50: #{tpu_custom_call.1} parent=47 // loop_header
        %s354 = sphi 0, %s358
        %p355 = scmp.ge.s32.totalorder %s354, 16
      $region51: #{tpu_custom_call.1} parent=47 // loop_header_branch
        %357 = sbr.rel (%p355) target = $region55
      $region52: #{tpu_custom_call.1} parent=47 // loop_body
        %s359 = smul.u32 %s354, 24
        %s360 = scalar_lea.vmem %s273, %s359
        %v361 = vld [vmem:[%s360] sm:$0xff]
        %v362 = vld [vmem:[%s360 + $0x8] sm:$0xff]
        %v363 = vld [vmem:[%s360 + $0x10] sm:$0x3]
        %s364 = sadd.s32 %s354, 1
        %s365 = smul.u32 %s364, 24
        %s366 = scalar_lea.vmem %s273, %s365
        %v367 = vld [vmem:[%s366] sm:$0xff]
        %v368 = vld [vmem:[%s366 + $0x8] sm:$0xff]
        %v369 = vld [vmem:[%s366 + $0x10] sm:$0x3]
        %s370 = sadd.s32 %s354, 2
        %s371 = smul.u32 %s370, 24
        %s372 = scalar_lea.vmem %s273, %s371
        %v373 = vld [vmem:[%s372] sm:$0xff]
        %v374 = vld [vmem:[%s372 + $0x8] sm:$0xff]
        %v375 = vld [vmem:[%s372 + $0x10] sm:$0x3]
        %vm379 = vcmask 1046528
        %v380 = vrot.slane %v361, 1
        %v381 = vrot.slane %v362, 1
        %v382 = vsel %vm379, %v380, %v381
        %v383 = vrot.slane %v363, 1
        %v384 = vsel %vm379, %v381, %v383
        %385 = vrot.lane.b32.xlu0 %v382, 4
        %v386 = vpop.permute.xlu0 %385
        %387 = vrot.lane.b32.xlu0 %v384, 4
        %v388 = vpop.permute.xlu0 %387
        %vm391 = vcmask 1045504
        %v392 = vrot.slane %v361, 2
        %v393 = vrot.slane %v362, 2
        %v394 = vsel %vm391, %v392, %v393
        %v395 = vrot.slane %v363, 2
        %v396 = vsel %vm391, %v393, %v395
        %397 = vrot.lane.b32.xlu0 %v394, 8
        %v398 = vpop.permute.xlu0 %397
        %399 = vrot.lane.b32.xlu0 %v396, 8
        %v400 = vpop.permute.xlu0 %399
        %405 = vrot.lane.b32.xlu0 %v367, 12
        %v406 = vpop.permute.xlu0 %405
        %407 = vrot.lane.b32.xlu0 %v368, 12
        %v408 = vpop.permute.xlu0 %407
        %v412 = vrot.slane %v367, 1
        %v413 = vrot.slane %v368, 1
        %v414 = vsel %vm379, %v412, %v413
        %v415 = vrot.slane %v369, 1
        %v416 = vsel %vm379, %v413, %v415
        %417 = vrot.lane.b32.xlu0 %v414, 16
        %v418 = vpop.permute.xlu0 %417
        %419 = vrot.lane.b32.xlu0 %v416, 16
        %v420 = vpop.permute.xlu0 %419
        %v423 = vrot.slane %v367, 2
        %v424 = vrot.slane %v368, 2
        %v425 = vsel %vm391, %v423, %v424
        %v426 = vrot.slane %v369, 2
        %v427 = vsel %vm391, %v424, %v426
        %428 = vrot.lane.b32.xlu0 %v425, 20
        %v429 = vpop.permute.xlu0 %428
        %430 = vrot.lane.b32.xlu0 %v427, 20
        %v431 = vpop.permute.xlu0 %430
        %436 = vrot.lane.b32.xlu0 %v373, 24
        %v437 = vpop.permute.xlu0 %436
        %438 = vrot.lane.b32.xlu0 %v374, 24
        %v439 = vpop.permute.xlu0 %438
        %v443 = vrot.slane %v373, 1
        %v444 = vrot.slane %v374, 1
        %v445 = vsel %vm379, %v443, %v444
        %v446 = vrot.slane %v375, 1
        %v447 = vsel %vm379, %v444, %v446
        %448 = vrot.lane.b32.xlu0 %v445, 28
        %v449 = vpop.permute.xlu0 %448
        %450 = vrot.lane.b32.xlu0 %v447, 28
        %v451 = vpop.permute.xlu0 %450
        %v454 = vrot.slane %v373, 2
        %v455 = vrot.slane %v374, 2
        %v456 = vsel %vm391, %v454, %v455
        %v457 = vrot.slane %v375, 2
        %v458 = vsel %vm391, %v455, %v457
        %459 = vrot.lane.b32.xlu0 %v456, 32
        %v460 = vpop.permute.xlu0 %459
        %461 = vrot.lane.b32.xlu0 %v458, 32
        %v462 = vpop.permute.xlu0 %461
        %vm465 = vcmask 31744
        %v466 = vsel %vm465, %v361, %v386
        %v467 = vsel %vm465, %v362, %v388
        %v468 = vsel %vm297, %v466, %v398
        %v469 = vsel %vm297, %v467, %v400
        %vm470 = vcmask 97280
        %v471 = vsel %vm470, %v468, %v406
        %v472 = vsel %vm470, %v469, %v408
        %vm473 = vcmask 130048
        %v474 = vsel %vm473, %v471, %v418
        %v475 = vsel %vm473, %v472, %v420
        %vm476 = vcmask 162816
        %v477 = vsel %vm476, %v474, %v429
        %v478 = vsel %vm476, %v475, %v431
        %vm479 = vcmask 195584
        %v480 = vsel %vm479, %v477, %v437
        %v481 = vsel %vm479, %v478, %v439
        %vm482 = vcmask 228352
        %v483 = vsel %vm482, %v480, %v449
        %v484 = vsel %vm482, %v481, %v451
        %vm485 = vcmask 261120
        %v486 = vsel %vm485, %v483, %v460
        %v487 = vsel %vm485, %v484, %v462
        %vm488 = vcmask 293888
        %v490 = vsel %vm488, %v486, 0
        %v493 = vsel %vm488, %v487, 0
        %vm495 = vcmask 1043456
        %v497 = vsel %vm495, %v283, 0
        %499 = vmatprep.subr.mxu0 0.0
        %500 = vmatpush1.msra.mxu0 %v279
        %501 = vmatprep.subr.mxu0 0.0
        %502 = vmatpush1.msra.mxu0 %v280
        %503 = vmatprep.subr.mxu0 0.0
        %504 = vmatpush1.msra.mxu0 %v281
        %505 = vmatprep.subr.mxu0 0.0
        %506 = vmatpush1.msra.mxu0 %v282
        %507 = vmatprep.subr.mxu0 0.0
        %508 = vmatpush1.msra.mxu0 %v497
        %509 = vmatprep.subr.mxu0 0.0
        %510 = vmatpush1.msra.mxu0 0.0
        %511 = vmatprep.subr.mxu0 0.0
        %512 = vmatpush1.msra.mxu0 0.0
        %513 = vmatprep.subr.mxu0 0.0
        %514 = vmatpush1.msra.mxu0 0.0
        %515 = vmatprep.subr.mxu0 0.0
        %516 = vmatpush1.msra.mxu0 0.0
        %517 = vmatprep.subr.mxu0 0.0
        %518 = vmatpush1.msra.mxu0 0.0
        %519 = vmatprep.subr.mxu0 0.0
        %520 = vmatpush1.msra.mxu0 0.0
        %521 = vmatprep.subr.mxu0 0.0
        %522 = vmatpush1.msra.mxu0 0.0
        %523 = vmatprep.subr.mxu0 0.0
        %524 = vmatpush1.msra.mxu0 0.0
        %525 = vmatprep.subr.mxu0 0.0
        %526 = vmatpush1.msra.mxu0 0.0
        %527 = vmatprep.subr.mxu0 0.0
        %528 = vmatpush1.msra.mxu0 0.0
        %529 = vmatprep.subr.mxu0 0.0
        %530 = vmatpush1.msra.mxu0 0.0
        %531 = vmatprep.subr.mxu0 0.0
        %532 = vmatpush1.msra.mxu0 0.0
        %533 = vmatprep.subr.mxu0 0.0
        %534 = vmatpush1.msra.mxu0 0.0
        %535 = vmatprep.subr.mxu0 0.0
        %536 = vmatpush1.msra.mxu0 0.0
        %537 = vmatprep.subr.mxu0 0.0
        %538 = vmatpush1.msra.mxu0 0.0
        %539 = vmatprep.subr.mxu0 0.0
        %540 = vmatpush1.msra.mxu0 0.0
        %541 = vmatprep.subr.mxu0 0.0
        %542 = vmatpush1.msra.mxu0 0.0
        %543 = vmatprep.subr.mxu0 0.0
        %544 = vmatpush1.msra.mxu0 0.0
        %545 = vmatprep.subr.mxu0 0.0
        %546 = vmatpush1.msra.mxu0 0.0
        %547 = vmatprep.subr.mxu0 0.0
        %548 = vmatpush1.msra.mxu0 0.0
        %549 = vmatprep.subr.mxu0 0.0
        %550 = vmatpush1.msra.mxu0 0.0
        %551 = vmatprep.subr.mxu0 0.0
        %552 = vmatpush1.msra.mxu0 0.0
        %553 = vmatprep.subr.mxu0 0.0
        %554 = vmatpush1.msra.mxu0 0.0
        %555 = vmatprep.subr.mxu0 0.0
        %556 = vmatpush1.msra.mxu0 0.0
        %557 = vmatprep.subr.mxu0 0.0
        %558 = vmatpush1.msra.mxu0 0.0
        %559 = vmatprep.subr.mxu0 0.0
        %560 = vmatpush1.msra.mxu0 0.0
        %561 = vmatprep.subr.mxu0 0.0
        %562 = vmatpush1.msra.mxu0 0.0
        %563 = vmatprep.mubr.f32.mxu0 0.0
        %564 = vmatmul.mubr.f32.gmra.mrb[0].mxu0 %v490
        %v565 = vpop.f32.mrb[0].mxu0
        %v566 = vadd.f32 0.0, %v565
        %v567 = vpop.f32.mrb[0].mxu0
        %568 = vmatprep.mubr.f32.mxu0 0.0
        %569 = vmatmul.mubr.f32.gmra.mrb[0].mxu0 %v493
        %v570 = vpop.f32.mrb[0].mxu0
        %v571 = vadd.f32 0.0, %v570
        %v572 = vpop.f32.mrb[0].mxu0
        %573 = vdwg.mxu0
        %v575 = vlaneseq
        %v576 = vshrl.u32 %v575, 7
        %v577 = vsub.s32 0, %v576
        %v578 = vrot.slane %v284, %v577
        %v580 = vmul.f32 %v566, %v578
        %v581 = vmul.f32 %v571, %v578
        %v583 = vlaneseq
        %v584 = vshrl.u32 %v583, 7
        %v585 = vsub.s32 0, %v584
        %v586 = vrot.slane %v285, %v585
        %v588 = vadd.f32 %v580, %v586
        %v589 = vadd.f32 %v581, %v586
        %v590 = vmax.f32 %v588, 0.0
        %v591 = vmax.f32 %v589, 0.0
        %vm594 = vcmask 1040384
        %v595 = vrot.slane %v590, 7
        %v596 = vrot.slane %v591, 7
        %v597 = vsel %vm594, %v595, %v596
        %v601 = vsel %vm594, 0.0, %v595
        %v602 = vsel %vm594, %v596, 0.0
        %s603 = scalar_lea.vmem [#allocation2], %s365
        %604 = vst.msk [vmem:[%s603] sm:$0xff] %vm297, %v601
        %605 = vst.msk [vmem:[%s603 + $0x8] sm:$0xff] %vm297, %v597
        %606 = vst.msk [vmem:[%s603 + $0x10] sm:$0x3] %vm300, %v602
      $region53: #{tpu_custom_call.1} parent=47 // loop_footer
        %s358 = sadd.s32 1, %s354
      $region54: #{tpu_custom_call.1} parent=47 // loop_footer_branch
        %353 = sbr.rel target = $region50
      $region55: #{tpu_custom_call.1} parent=47 // loop_exit
        _
      loop: start=0, step=1, limit=16
      $region56: #{tpu_custom_call.1} parent=47 // loop_pre_header
        _
      $region57: #{tpu_custom_call.1} parent=47 // loop_header
        %s608 = sphi 0, %s612
        %p609 = scmp.ge.s32.totalorder %s608, 16
      $region58: #{tpu_custom_call.1} parent=47 // loop_header_branch
        %611 = sbr.rel (%p609) target = $region62
      $region59: #{tpu_custom_call.1} parent=47 // loop_body
        %s613 = smul.u32 %s608, 24
        %s614 = scalar_lea.vmem [#allocation2], %s613
        %v615 = vld [vmem:[%s614] sm:$0xff]
        %v616 = vld [vmem:[%s614 + $0x8] sm:$0xff]
        %v617 = vld [vmem:[%s614 + $0x10] sm:$0x3]
        %s618 = sadd.s32 %s608, 1
        %s619 = smul.u32 %s618, 24
        %s620 = scalar_lea.vmem [#allocation2], %s619
        %v621 = vld [vmem:[%s620] sm:$0xff]
        %v622 = vld [vmem:[%s620 + $0x8] sm:$0xff]
        %v623 = vld [vmem:[%s620 + $0x10] sm:$0x3]
        %s624 = sadd.s32 %s608, 2
        %s625 = smul.u32 %s624, 24
        %s626 = scalar_lea.vmem [#allocation2], %s625
        %v627 = vld [vmem:[%s626] sm:$0xff]
        %v628 = vld [vmem:[%s626 + $0x8] sm:$0xff]
        %v629 = vld [vmem:[%s626 + $0x10] sm:$0x3]
        %vm633 = vcmask 1046528
        %v634 = vrot.slane %v615, 1
        %v635 = vrot.slane %v616, 1
        %v636 = vsel %vm633, %v634, %v635
        %v637 = vrot.slane %v617, 1
        %v638 = vsel %vm633, %v635, %v637
        %639 = vrot.lane.b32.xlu0 %v636, 8
        %v640 = vpop.permute.xlu0 %639
        %641 = vrot.lane.b32.xlu0 %v638, 8
        %v642 = vpop.permute.xlu0 %641
        %vm645 = vcmask 1045504
        %v646 = vrot.slane %v615, 2
        %v647 = vrot.slane %v616, 2
        %v648 = vsel %vm645, %v646, %v647
        %v649 = vrot.slane %v617, 2
        %v650 = vsel %vm645, %v647, %v649
        %651 = vrot.lane.b32.xlu0 %v648, 16
        %v652 = vpop.permute.xlu0 %651
        %653 = vrot.lane.b32.xlu0 %v650, 16
        %v654 = vpop.permute.xlu0 %653
        %659 = vrot.lane.b32.xlu0 %v621, 24
        %v660 = vpop.permute.xlu0 %659
        %661 = vrot.lane.b32.xlu0 %v622, 24
        %v662 = vpop.permute.xlu0 %661
        %v666 = vrot.slane %v621, 1
        %v667 = vrot.slane %v622, 1
        %v668 = vsel %vm633, %v666, %v667
        %v669 = vrot.slane %v623, 1
        %v670 = vsel %vm633, %v667, %v669
        %671 = vrot.lane.b32.xlu0 %v668, 32
        %v672 = vpop.permute.xlu0 %671
        %673 = vrot.lane.b32.xlu0 %v670, 32
        %v674 = vpop.permute.xlu0 %673
        %v677 = vrot.slane %v621, 2
        %v678 = vrot.slane %v622, 2
        %v679 = vsel %vm645, %v677, %v678
        %v680 = vrot.slane %v623, 2
        %v681 = vsel %vm645, %v678, %v680
        %682 = vrot.lane.b32.xlu0 %v679, 40
        %v683 = vpop.permute.xlu0 %682
        %684 = vrot.lane.b32.xlu0 %v681, 40
        %v685 = vpop.permute.xlu0 %684
        %690 = vrot.lane.b32.xlu0 %v627, 48
        %v691 = vpop.permute.xlu0 %690
        %692 = vrot.lane.b32.xlu0 %v628, 48
        %v693 = vpop.permute.xlu0 %692
        %v697 = vrot.slane %v627, 1
        %v698 = vrot.slane %v628, 1
        %v699 = vsel %vm633, %v697, %v698
        %v700 = vrot.slane %v629, 1
        %v701 = vsel %vm633, %v698, %v700
        %702 = vrot.lane.b32.xlu0 %v699, 56
        %v703 = vpop.permute.xlu0 %702
        %704 = vrot.lane.b32.xlu0 %v701, 56
        %v705 = vpop.permute.xlu0 %704
        %v708 = vrot.slane %v627, 2
        %v709 = vrot.slane %v628, 2
        %v710 = vsel %vm645, %v708, %v709
        %v711 = vrot.slane %v629, 2
        %v712 = vsel %vm645, %v709, %v711
        %713 = vrot.lane.b32.xlu0 %v710, 64
        %v714 = vpop.permute.xlu0 %713
        %715 = vrot.lane.b32.xlu0 %v712, 64
        %v716 = vpop.permute.xlu0 %715
        %v719 = vsel %vm297, %v615, %v640
        %v720 = vsel %vm297, %v616, %v642
        %vm721 = vcmask 130048
        %v722 = vsel %vm721, %v719, %v652
        %v723 = vsel %vm721, %v720, %v654
        %vm724 = vcmask 195584
        %v725 = vsel %vm724, %v722, %v660
        %v726 = vsel %vm724, %v723, %v662
        %vm727 = vcmask 261120
        %v728 = vsel %vm727, %v725, %v672
        %v729 = vsel %vm727, %v726, %v674
        %vm730 = vcmask 326656
        %v731 = vsel %vm730, %v728, %v683
        %v732 = vsel %vm730, %v729, %v685
        %vm733 = vcmask 392192
        %v734 = vsel %vm733, %v731, %v691
        %v735 = vsel %vm733, %v732, %v693
        %vm736 = vcmask 457728
        %v737 = vsel %vm736, %v734, %v703
        %v738 = vsel %vm736, %v735, %v705
        %vm739 = vcmask 523264
        %v740 = vsel %vm739, %v737, %v714
        %v741 = vsel %vm739, %v738, %v716
        %vm742 = vcmask 588800
        %v744 = vsel %vm742, %v740, 0
        %v747 = vsel %vm742, %v741, 0
        %749 = vmatprep.subr.mxu0 0.0
        %750 = vmatpush1.msra.mxu0 %v286
        %751 = vmatprep.subr.mxu0 0.0
        %752 = vmatpush1.msra.mxu0 %v287
        %753 = vmatprep.subr.mxu0 0.0
        %754 = vmatpush1.msra.mxu0 %v288
        %755 = vmatprep.subr.mxu0 0.0
        %756 = vmatpush1.msra.mxu0 %v289
        %757 = vmatprep.subr.mxu0 0.0
        %758 = vmatpush1.msra.mxu0 %v290
        %759 = vmatprep.subr.mxu0 0.0
        %760 = vmatpush1.msra.mxu0 %v291
        %761 = vmatprep.subr.mxu0 0.0
        %762 = vmatpush1.msra.mxu0 %v292
        %763 = vmatprep.subr.mxu0 0.0
        %764 = vmatpush1.msra.mxu0 %v293
        %765 = vmatprep.subr.mxu0 0.0
        %766 = vmatpush1.msra.mxu0 %v294
        %767 = vmatprep.subr.mxu0 0.0
        %768 = vmatpush1.msra.mxu0 0.0
        %769 = vmatprep.subr.mxu0 0.0
        %770 = vmatpush1.msra.mxu0 0.0
        %771 = vmatprep.subr.mxu0 0.0
        %772 = vmatpush1.msra.mxu0 0.0
        %773 = vmatprep.subr.mxu0 0.0
        %774 = vmatpush1.msra.mxu0 0.0
        %775 = vmatprep.subr.mxu0 0.0
        %776 = vmatpush1.msra.mxu0 0.0
        %777 = vmatprep.subr.mxu0 0.0
        %778 = vmatpush1.msra.mxu0 0.0
        %779 = vmatprep.subr.mxu0 0.0
        %780 = vmatpush1.msra.mxu0 0.0
        %781 = vmatprep.subr.mxu0 0.0
        %782 = vmatpush1.msra.mxu0 0.0
        %783 = vmatprep.subr.mxu0 0.0
        %784 = vmatpush1.msra.mxu0 0.0
        %785 = vmatprep.subr.mxu0 0.0
        %786 = vmatpush1.msra.mxu0 0.0
        %787 = vmatprep.subr.mxu0 0.0
        %788 = vmatpush1.msra.mxu0 0.0
        %789 = vmatprep.subr.mxu0 0.0
        %790 = vmatpush1.msra.mxu0 0.0
        %791 = vmatprep.subr.mxu0 0.0
        %792 = vmatpush1.msra.mxu0 0.0
        %793 = vmatprep.subr.mxu0 0.0
        %794 = vmatpush1.msra.mxu0 0.0
        %795 = vmatprep.subr.mxu0 0.0
        %796 = vmatpush1.msra.mxu0 0.0
        %797 = vmatprep.subr.mxu0 0.0
        %798 = vmatpush1.msra.mxu0 0.0
        %799 = vmatprep.subr.mxu0 0.0
        %800 = vmatpush1.msra.mxu0 0.0
        %801 = vmatprep.subr.mxu0 0.0
        %802 = vmatpush1.msra.mxu0 0.0
        %803 = vmatprep.subr.mxu0 0.0
        %804 = vmatpush1.msra.mxu0 0.0
        %805 = vmatprep.subr.mxu0 0.0
        %806 = vmatpush1.msra.mxu0 0.0
        %807 = vmatprep.subr.mxu0 0.0
        %808 = vmatpush1.msra.mxu0 0.0
        %809 = vmatprep.subr.mxu0 0.0
        %810 = vmatpush1.msra.mxu0 0.0
        %811 = vmatprep.subr.mxu0 0.0
        %812 = vmatpush1.msra.mxu0 0.0
        %813 = vmatprep.mubr.f32.mxu0 0.0
        %814 = vmatmul.mubr.f32.gmra.mrb[0].mxu0 %v744
        %v815 = vpop.f32.mrb[0].mxu0
        %v816 = vadd.f32 0.0, %v815
        %v817 = vpop.f32.mrb[0].mxu0
        %818 = vmatprep.mubr.f32.mxu0 0.0
        %819 = vmatmul.mubr.f32.gmra.mrb[0].mxu0 %v747
        %v820 = vpop.f32.mrb[0].mxu0
        %v821 = vadd.f32 0.0, %v820
        %v822 = vpop.f32.mrb[0].mxu0
        %823 = vdwg.mxu0
        %v825 = vlaneseq
        %v826 = vshrl.u32 %v825, 7
        %v827 = vsub.s32 0, %v826
        %v828 = vrot.slane %v295, %v827
        %v830 = vmul.f32 %v816, %v828
        %v831 = vmul.f32 %v821, %v828
        %v833 = vlaneseq
        %v834 = vshrl.u32 %v833, 7
        %v835 = vsub.s32 0, %v834
        %v836 = vrot.slane %v296, %v835
        %v838 = vadd.f32 %v830, %v836
        %v839 = vadd.f32 %v831, %v836
        %v840 = vmax.f32 %v838, 0.0
        %v841 = vmax.f32 %v839, 0.0
        %s842 = smul.u32 %s608, 16
        %s843 = scalar_lea.vmem %s278, %s842
        %844 = vst.msk [vmem:[%s843] sm:$0xff] %vm297, %v840
        %845 = vst.msk [vmem:[%s843 + $0x8] sm:$0xff] %vm297, %v841
      $region60: #{tpu_custom_call.1} parent=47 // loop_footer
        %s612 = sadd.s32 1, %s608
      $region61: #{tpu_custom_call.1} parent=47 // loop_footer_branch
        %607 = sbr.rel target = $region57
      $region62: #{tpu_custom_call.1} parent=47 // loop_exit
        _
      %p846 = scmp.lt.s32.totalorder %s18, 1
      %s847 = scalar_select %p846, %s18, 1
      %s848 = smul.addr %s847, 32
      %s849 = smul.addr %s848, 8
      %s850 = scalar_lea.vmem %s7, %s849
      // Predicated region
      $region63: #{tpu_custom_call.1} parent=47 // pred_check
        %p851 = pneg %p188
      $region64: #{tpu_custom_call.1} parent=47 // pred_check_branch
        %853 = sbr.rel (%p851) target = $region66
      $region65: #{tpu_custom_call.1} parent=47 // pred_region
        _
      $region66: #{tpu_custom_call.1} parent=47 // pred_fallthru
        _
    $region48: #{tpu_custom_call.1} parent=5 // pred_fallthru
      _
    %p854 = scmp.le.s32.totalorder 2, %s13
    // Predicated region
    $region67: #{tpu_custom_call.1} parent=5 // pred_check
      %p855 = pneg %p854
    $region68: #{tpu_custom_call.1} parent=5 // pred_check_branch
      %857 = sbr.rel (%p855) target = $region70
    $region69: #{tpu_custom_call.1} parent=5 // pred_region
      %s858 = ssub.s32 %s13, 2
      // Predicated region
      $region71: #{tpu_custom_call.1} parent=69 // pred_check
        %p859 = pneg %p194
      $region72: #{tpu_custom_call.1} parent=69 // pred_check_branch
        %861 = sbr.rel (%p859) target = $region74
      $region73: #{tpu_custom_call.1} parent=69 // pred_region
        %p862 = scmp.lt.s32.totalorder %s19, 1
        %s863 = scalar_select %p862, %s19, 1
        %s864 = smul.addr %s863, 32
        %s865 = smul.addr %s864, 8
        %s866 = scalar_lea.vmem %s7, %s865
      $region74: #{tpu_custom_call.1} parent=69 // pred_fallthru
        _
    $region70: #{tpu_custom_call.1} parent=5 // pred_fallthru
      _
  $region6: #{tpu_custom_call.1} parent=0 // loop_footer
    %s17 = sadd.s32 1, %s13
  $region7: #{tpu_custom_call.1} parent=0 // loop_footer_branch
    %12 = sbr.rel target = $region3
  $region8: #{tpu_custom_call.1} parent=0 // loop_exit
    _

</llo_original>
